<compile_context>
chip_gen: v6e
topology: v6e:2x2x1
jax: 0.10.0
libtpu: 0.0.40
codegen_flags: <defaults>
</compile_context>

<pallas_src>
import functools

import jax
import jax.numpy as jnp
from jax.experimental import pallas as pl
from jax.experimental.pallas import tpu as pltpu

_LANE = 128


def _vmem_capacity_bytes() -> int:
    """Best-effort per-TensorCore VMEM capacity; conservative default (v7x)."""
    try:
        info = pltpu.get_tpu_info()
        cap = getattr(info, "vmem_capacity_bytes", None)
        if cap:
            return int(cap)
    except Exception:
        pass
    return 64 * 1024 * 1024


def _num_tensorcores() -> int:
    """Best-effort TensorCores per chip (v7x has 2). Defaults to 1 (inert)."""
    try:
        dev = jax.devices()[0]
        for attr in ("num_cores", "core_count", "num_tensorcores"):
            v = getattr(dev, attr, None)
            if isinstance(v, int) and v > 0:
                return v
    except Exception:
        pass
    return 1


def _compiler_params(dimension_semantics, ws_bytes, capacity):
    # Cap at 0.85 * physical VMEM (headroom for Mosaic internal scratch /
    # semaphores); request at least 32 MiB or 1.25x the estimated working set.
    budget = int(0.85 * capacity)
    limit = int(min(budget, max(32 * 1024 * 1024, int(ws_bytes * 1.25))))
    return pltpu.CompilerParams(
        dimension_semantics=dimension_semantics,
        vmem_limit_bytes=limit,
    )


def _pick_tk(n, k, itemsize, budget_bytes):
    """Lane-tile for the two-pass path.

    Uses the real per-step working set (double-buffered in + out slabs plus an
    f32 compute temp), targets 512-2048 lanes, and does NOT require tk to
    divide K (the grid uses pl.cdiv with an in-kernel tail mask)."""
    if k <= _LANE:
        return k
    bytes_per_col = n * (4 * itemsize + 4)
    budget_tk = (budget_bytes // max(bytes_per_col, 1)) // _LANE * _LANE
    cap = min(2048, (k // _LANE) * _LANE)
    return int(max(_LANE, min(budget_tk, cap)))


# ---------------------------------------------------------------------------
# Single-pass kernel: one grid step per batch element, whole (N, K) slab.
# ---------------------------------------------------------------------------
def _gln_fused_kernel(y_ref, gamma_ref, beta_ref, o_ref, *, inv_count, eps):
    # Upcast once; both reductions and the apply use the same f32 view.
    yf = y_ref[...].astype(jnp.float32)              # (N, K)
    s = jnp.sum(yf)
    ss = jnp.sum(yf * yf)
    mean = s * inv_count
    var = jnp.maximum(ss * inv_count - mean * mean, 0.0)
    inv_std = jax.lax.rsqrt(var + eps)               # EUP slot; no vector div
    scale = gamma_ref[...] * inv_std                 # (N, 1), f32
    shift = beta_ref[...] - mean * scale             # (N, 1), f32
    o_ref[...] = (yf * scale + shift).astype(o_ref.dtype)


# ---------------------------------------------------------------------------
# Two-pass (K-tiled) kernels for slabs too large for VMEM.
# ---------------------------------------------------------------------------
def _gln_stats_kernel(y_ref, sum_ref, ssq_ref, *, k_total, tk, need_mask):
    k = pl.program_id(1)
    yf = y_ref[...].astype(jnp.float32)              # (N, tk)
    if need_mask:
        # Ragged last tile: zero out lanes past the true length (jnp.where so
        # any garbage/NaN in the OOB part of the block cannot propagate).
        rem = k_total - k * tk
        lane = jax.lax.broadcasted_iota(jnp.int32, yf.shape, 1)
        yf = jnp.where(lane < rem, yf, 0.0)
    s = jnp.sum(yf)
    ss = jnp.sum(yf * yf)

    @pl.when(k == 0)
    def _():
        sum_ref[...] = jnp.zeros_like(sum_ref)
        ssq_ref[...] = jnp.zeros_like(ssq_ref)

    sum_ref[...] += s
    ssq_ref[...] += ss


def _gln_apply_kernel(y_ref, scale_ref, shift_ref, o_ref):
    # scale/shift are pre-folded per (batch, channel); OOB lanes of a ragged
    # last K tile are discarded by the output block write.
    o_ref[...] = (
        y_ref[...].astype(jnp.float32) * scale_ref[...] + shift_ref[...]
    ).astype(o_ref.dtype)


# ---------------------------------------------------------------------------
# Wrapper
# ---------------------------------------------------------------------------
def global_layer_norm(y, gamma, beta, *, eps=1e-5, two_pass=None, tk=None):
    """gLN forward.

    Args:
      y:     (M, N, K) input.
      gamma: per-channel scale, any shape reshapable to (N, 1).
      beta:  per-channel shift, any shape reshapable to (N, 1).
      eps:   variance epsilon (module default 1e-5).
      two_pass: None = auto (VMEM-budget / core-count based), True/False force.
      tk: optional lane-tile for the two-pass path (multiple of 128, or == K).
    Returns:
      (M, N, K) normalized output, same dtype as y.
    """
    M, N, K = y.shape
    gamma = jnp.reshape(gamma, (N, 1)).astype(jnp.float32)
    beta = jnp.reshape(beta, (N, 1)).astype(jnp.float32)
    inv_count = 1.0 / float(N * K)

    itemsize = y.dtype.itemsize
    capacity = _vmem_capacity_bytes()
    # Fused-path per-step working set: double-buffered in + out slabs plus an
    # f32-sized compute temp (conservative; Mosaic usually streams the upcast).
    single_ws = N * K * (4 * itemsize + 4)

    if two_pass is None:
        two_pass = single_ws > int(0.8 * 0.85 * capacity)
        # v7x: grid=(1,) feeds only one of the two TensorCores; the K-parallel
        # two-pass layout keeps both busy (worth it despite 1.5x HBM traffic).
        if not two_pass and M == 1 and K >= 8 * _LANE and _num_tensorcores() >= 2:
            two_pass = True

    if not two_pass:
        # Single pass: one HBM read + one write, no padding/slicing — the block
        # equals the full array dims so the (8,128) rule does not apply.
        return pl.pallas_call(
            functools.partial(_gln_fused_kernel, inv_count=inv_count, eps=eps),
            out_shape=jax.ShapeDtypeStruct((M, N, K), y.dtype),
            grid_spec=pltpu.PrefetchScalarGridSpec(
                num_scalar_prefetch=0,
                grid=(M,),
                in_specs=[
                    pl.BlockSpec((pl.Squeezed(), N, K), lambda m: (m, 0, 0)),
                    pl.BlockSpec((N, 1), lambda m: (0, 0)),
                    pl.BlockSpec((N, 1), lambda m: (0, 0)),
                ],
                out_specs=pl.BlockSpec((pl.Squeezed(), N, K),
                                       lambda m: (m, 0, 0)),
            ),
            compiler_params=_compiler_params(("parallel",), single_ws, capacity),
        )(y, gamma, beta)

    # -------------------- two-pass (K-tiled) fallback --------------------
    if tk is None:
        tk = _pick_tk(N, K, itemsize, budget_bytes=int(0.5 * 0.85 * capacity))
    assert tk == K or tk % _LANE == 0, (tk, K)
    kt = pl.cdiv(K, tk)
    tile_ws = N * tk * (4 * itemsize + 4)

    # Pass 1: per-batch sum / sum-of-squares; K axis is the reduction.
    sums, ssqs = pl.pallas_call(
        functools.partial(_gln_stats_kernel, k_total=K, tk=tk,
                          need_mask=(K % tk != 0)),
        out_shape=(
            jax.ShapeDtypeStruct((M, 1, 1), jnp.float32),
            jax.ShapeDtypeStruct((M, 1, 1), jnp.float32),
        ),
        grid_spec=pltpu.PrefetchScalarGridSpec(
            num_scalar_prefetch=0,
            grid=(M, kt),
            in_specs=[
                pl.BlockSpec((pl.Squeezed(), N, tk), lambda m, k: (m, 0, k)),
            ],
            out_specs=[
                pl.BlockSpec((pl.Squeezed(), 1, 1), lambda m, k: (m, 0, 0)),
                pl.BlockSpec((pl.Squeezed(), 1, 1), lambda m, k: (m, 0, 0)),
            ],
        ),
        compiler_params=_compiler_params(("parallel", "arbitrary"),
                                         tile_ws, capacity),
    )(y)

    # Fold mean / rsqrt / gamma / beta into per-(batch, channel) scale & shift
    # once — tiny (M, N, 1) arrays — so the apply pass is a pure fma.
    mean = sums * inv_count                              # (M, 1, 1)
    var = jnp.maximum(ssqs * inv_count - mean * mean, 0.0)
    inv_std = jax.lax.rsqrt(var + eps)
    scale = gamma[None, :, :] * inv_std                  # (M, N, 1)
    shift = beta[None, :, :] - mean * scale              # (M, N, 1)

    # Pass 2: y * scale + shift; both grid axes parallel (feeds both v7x
    # TensorCores even at tiny batch sizes).
    return pl.pallas_call(
        _gln_apply_kernel,
        out_shape=jax.ShapeDtypeStruct((M, N, K), y.dtype),
        grid_spec=pltpu.PrefetchScalarGridSpec(
            num_scalar_prefetch=0,
            grid=(M, kt),
            in_specs=[
                pl.BlockSpec((pl.Squeezed(), N, tk), lambda m, k: (m, 0, k)),
                pl.BlockSpec((pl.Squeezed(), N, 1), lambda m, k: (m, 0, 0)),
                pl.BlockSpec((pl.Squeezed(), N, 1), lambda m, k: (m, 0, 0)),
            ],
            out_specs=pl.BlockSpec((pl.Squeezed(), N, tk),
                                   lambda m, k: (m, 0, k)),
        ),
        compiler_params=_compiler_params(("parallel", "parallel"),
                                         tile_ws, capacity),
    )(y, scale, shift)


def _reference_gln(y, gamma, beta, eps=1e-5):
    # Pure-JAX reference mirroring the PyTorch gLN (two-pass variance).
    mean = jnp.mean(y, axis=(1, 2), keepdims=True)
    var = jnp.mean((y - mean) ** 2, axis=(1, 2), keepdims=True)
    g = gamma.reshape(1, -1, 1)
    b = beta.reshape(1, -1, 1)
    return g * (y - mean) / jnp.sqrt(var + eps) + b


if __name__ == "__main__":
    # Test 1: small shapes, single-pass fused path, K not a multiple of 128
    # (no padding: full-dim blocks). Parameters match reset: gamma=1, beta=0.
    M, N, K = 2, 4, 16  # batch, channels, length
    y = jax.random.normal(jax.random.PRNGKey(0), (M, N, K), dtype=jnp.float32)
    gamma = jnp.ones((N, 1), dtype=jnp.float32)
    beta = jnp.zeros((N, 1), dtype=jnp.float32)

    out = jax.block_until_ready(global_layer_norm(y, gamma, beta))
    ref = _reference_gln(y, gamma, beta)
    assert out.shape == (M, N, K)
    assert jnp.allclose(out, ref, atol=1e-5, rtol=1e-5)

    # Test 2: non-trivial gamma/beta, forced K-tiled two-pass path with a
    # ragged last tile (K=300, tk=128 -> 3 tiles, last tile 44 valid lanes).
    M2, N2, K2 = 2, 8, 300
    k1, k2, k3 = jax.random.split(jax.random.PRNGKey(1), 3)
    y2 = jax.random.normal(k1, (M2, N2, K2), dtype=jnp.float32)
    g2 = jax.random.normal(k2, (N2, 1), dtype=jnp.float32)
    b2 = jax.random.normal(k3, (N2, 1), dtype=jnp.float32)

    out2 = jax.block_until_ready(
        global_layer_norm(y2, g2, b2, two_pass=True, tk=128))
    ref2 = _reference_gln(y2, g2, b2)
    assert out2.shape == (M2, N2, K2)
    assert jnp.allclose(out2, ref2, atol=2e-5, rtol=2e-5)

    # Test 3: bf16 input on the fused path (stats accumulate in f32 via a
    # single upcast; output quantized back to bf16).
    y3f = jax.random.normal(jax.random.PRNGKey(2), (2, 8, 200), jnp.float32)
    y3 = y3f.astype(jnp.bfloat16)
    g3 = jnp.ones((8, 1), jnp.float32)
    b3 = jnp.zeros((8, 1), jnp.float32)
    out3 = jax.block_until_ready(global_layer_norm(y3, g3, b3))
    ref3 = _reference_gln(y3.astype(jnp.float32), g3, b3)
    assert out3.shape == (2, 8, 200) and out3.dtype == jnp.bfloat16
    assert jnp.allclose(out3.astype(jnp.float32), ref3, atol=5e-2, rtol=5e-2)

    print("KERNEL_OK")
</pallas_src>

<mosaic_0001>
module attributes {stable_mosaic.version = 11 : i64} {
  func.func @_gln_fused_kernel(%arg0: i32, %arg1: memref<1x4x16xf32, #tpu.memory_space<vmem>>, %arg2: memref<4x1xf32, #tpu.memory_space<vmem>>, %arg3: memref<4x1xf32, #tpu.memory_space<vmem>>, %arg4: memref<1x4x16xf32, #tpu.memory_space<vmem>>) attributes {dimension_semantics = [#tpu.dimension_semantics<parallel>], iteration_bounds = array<i64: 2>, scalar_prefetch = 0 : i64, scratch_operands = 0 : i64, tpu.core_type = #tpu.core_type<tc>, window_params = [{transform_indices = @transform_0, window_bounds = array<i64: 1, 4, 16>}, {pipeline_mode = #tpu.pipeline_mode<synchronous>, transform_indices = @transform_1, window_bounds = array<i64: 4, 1>}, {pipeline_mode = #tpu.pipeline_mode<synchronous>, transform_indices = @transform_2, window_bounds = array<i64: 4, 1>}, {transform_indices = @transform_3, window_bounds = array<i64: 1, 4, 16>}]} {
    %c0 = arith.constant 0 : index
    %c0_0 = arith.constant 0 : index
    %c0_1 = arith.constant 0 : index
    %0 = vector.load %arg1[%c0, %c0_0, %c0_1] : memref<1x4x16xf32, #tpu.memory_space<vmem>>, vector<1x4x16xf32>
    %1 = vector.shape_cast %0 : vector<1x4x16xf32> to vector<4x16xf32>
    %2 = vector.shape_cast %1 : vector<4x16xf32> to vector<1x4x16xf32>
    %cst = arith.constant dense<0.000000e+00> : vector<1xf32>
    %3 = vector.multi_reduction <add>, %2, %cst [1, 2] : vector<1x4x16xf32> to vector<1xf32>
    %4 = vector.shape_cast %3 : vector<1xf32> to vector<1x1x1xf32>
    %5 = vector.extract %4[0, 0, 0] : f32 from vector<1x1x1xf32>
    %6 = arith.mulf %1, %1 : vector<4x16xf32>
    %7 = vector.shape_cast %6 : vector<4x16xf32> to vector<1x4x16xf32>
    %cst_2 = arith.constant dense<0.000000e+00> : vector<1xf32>
    %8 = vector.multi_reduction <add>, %7, %cst_2 [1, 2] : vector<1x4x16xf32> to vector<1xf32>
    %9 = vector.shape_cast %8 : vector<1xf32> to vector<1x1x1xf32>
    %10 = vector.extract %9[0, 0, 0] : f32 from vector<1x1x1xf32>
    %cst_3 = arith.constant 1.562500e-02 : f32
    %11 = arith.mulf %5, %cst_3 : f32
    %cst_4 = arith.constant 1.562500e-02 : f32
    %12 = arith.mulf %10, %cst_4 : f32
    %13 = arith.mulf %11, %11 : f32
    %14 = arith.subf %12, %13 : f32
    %cst_5 = arith.constant 0.000000e+00 : f32
    %15 = arith.maximumf %14, %cst_5 : f32
    %cst_6 = arith.constant 9.99999974E-6 : f32
    %16 = arith.addf %15, %cst_6 : f32
    %17 = math.rsqrt %16 : f32
    %c0_7 = arith.constant 0 : index
    %c0_8 = arith.constant 0 : index
    %18 = vector.load %arg2[%c0_7, %c0_8] : memref<4x1xf32, #tpu.memory_space<vmem>>, vector<4x1xf32>
    %19 = vector.broadcast %17 : f32 to vector<4x1xf32>
    %20 = arith.mulf %18, %19 : vector<4x1xf32>
    %c0_9 = arith.constant 0 : index
    %c0_10 = arith.constant 0 : index
    %21 = vector.load %arg3[%c0_9, %c0_10] : memref<4x1xf32, #tpu.memory_space<vmem>>, vector<4x1xf32>
    %22 = vector.broadcast %11 : f32 to vector<4x1xf32>
    %23 = arith.mulf %22, %20 : vector<4x1xf32>
    %24 = arith.subf %21, %23 : vector<4x1xf32>
    %25 = vector.broadcast %20 : vector<4x1xf32> to vector<4x16xf32>
    %26 = arith.mulf %1, %25 : vector<4x16xf32>
    %27 = vector.broadcast %24 : vector<4x1xf32> to vector<4x16xf32>
    %28 = arith.addf %26, %27 : vector<4x16xf32>
    %c0_11 = arith.constant 0 : index
    %c0_12 = arith.constant 0 : index
    %c0_13 = arith.constant 0 : index
    %29 = vector.load %arg4[%c0_11, %c0_12, %c0_13] : memref<1x4x16xf32, #tpu.memory_space<vmem>>, vector<1x4x16xf32>
    %30 = vector.shape_cast %29 : vector<1x4x16xf32> to vector<4x16xf32>
    %31 = vector.shape_cast %28 : vector<4x16xf32> to vector<1x4x16xf32>
    tpu.vector_store %arg4[%c0_11, %c0_12, %c0_13], %31 {strides = array<i32>} : memref<1x4x16xf32, #tpu.memory_space<vmem>>, vector<1x4x16xf32>,
    return
  }
  func.func @transform_0(%arg0: i32) -> (i32, i32, i32) {
    %c0_i32 = arith.constant 0 : i32
    %c0_i32_0 = arith.constant 0 : i32
    %c0_i32_1 = arith.constant 0 : i32
    return %arg0, %c0_i32, %c0_i32_0 : i32, i32, i32
  }
  func.func @transform_1(%arg0: i32) -> (i32, i32) {
    %c0_i32 = arith.constant 0 : i32
    %c0_i32_0 = arith.constant 0 : i32
    %c0_i32_1 = arith.constant 0 : i32
    return %c0_i32, %c0_i32_0 : i32, i32
  }
  func.func @transform_2(%arg0: i32) -> (i32, i32) {
    %c0_i32 = arith.constant 0 : i32
    %c0_i32_0 = arith.constant 0 : i32
    %c0_i32_1 = arith.constant 0 : i32
    return %c0_i32, %c0_i32_0 : i32, i32
  }
  func.func @transform_3(%arg0: i32) -> (i32, i32, i32) {
    %c0_i32 = arith.constant 0 : i32
    %c0_i32_0 = arith.constant 0 : i32
    %c0_i32_1 = arith.constant 0 : i32
    return %arg0, %c0_i32, %c0_i32_0 : i32, i32, i32
  }
}

</mosaic_0001>

<llo_original>
// kernel: tpu_custom_call.1
$region0: #{tpu_custom_call.1}
  #allocation0 [shape = 'u32[]', space=smem, size = 0x4, offset = 0x4, fixed_abs, tag = 'smem constant byte address 0x4 - core index']
  #allocation1 [shape = 'u32[144,128]{1,0:T(1,128)}', space=vmem, size = 0x12000, scoped, tag = 'internal scratch']
  %s0 = inlined_call_operand.vmem [shape: f32[2,4,16], index: 0, kind: input, shape index: {}]
  %s1 = inlined_call_operand.vmem [shape: f32[4,1], index: 1, kind: input, shape index: {}]
  %s2 = inlined_call_operand.vmem [shape: f32[4,1], index: 2, kind: input, shape index: {}]
  %s3 = inlined_call_operand.hbm [shape: f32[2,4,16], index: 3, kind: output, shape index: {}]
  %s4 = sld [smem:[#allocation0]]
  $region45: #{tpu_custom_call.1} parent=0
    _
  %s6 = ssub.s32 1, %s4
  %s7 = scalar_select 0, %s6, %s4
  $region1: #{tpu_custom_call.1} parent=0
    #allocation2 [shape = 'u8[4096]{0}', space=vmem, size = 0x1000, scoped, tag = 'output window, operand 0']
    #allocation3 [shape = 's32[2]{0}', space=sflag, size = 0x8, scoped, tag = 'scoped memory for tpu_custom_call.1']
    %8 = vsyncpa [#allocation3], 0
    %s9 = scalar_lea.sflag [#allocation3], 1
    %10 = vsyncpa %s9, 0
    loop: start=0, step=1, limit=4
    $region2: #{tpu_custom_call.1} parent=1 // loop_pre_header
      _
    $region3: #{tpu_custom_call.1} parent=1 // loop_header
      %s12 = sphi 0, %s16
      %p13 = scmp.ge.s32.totalorder %s12, 4
      %s22 = sphi 0, %s24
      %s25 = sphi 0, %s22
      %s26 = sphi 0, %s25
      %s42 = sphi 0, %s26
      %s46 = sphi 0, %s46
      %s48 = sphi 0, %s46
      %s49 = sphi 0, %s48
      %s63 = sphi 0, %s49
      %s67 = sphi 0, %s67
      %s69 = sphi 0, %s67
      %s70 = sphi 0, %s69
      %s84 = sphi 0, %s70
      %s90 = sphi 0, %s92
      %s93 = sphi 0, %s90
      %s94 = sphi 0, %s93
      %s110 = sphi 0, %s94
    $region4: #{tpu_custom_call.1} parent=1 // loop_header_branch
      %15 = sbr.rel (%p13) target = $region8
    $region5: #{tpu_custom_call.1} parent=1 // loop_body
      %s17 = ssub.s32 %s12, 1
      %s18 = ssub.s32 %s12, 2
      %s19 = sadd.s32 %s12, 1
      %s20 = ssub.s32 %s12, %s19
      %p21 = scmp.eq.s32.totalorder %s20, 0
      %s23 = sadd.s32 %s22, 1
      %s24 = scalar_select %p21, %s22, %s23
      %p27 = pneg %p21
      %p28 = scmp.eq.s32.totalorder %s12, 1
      %p29 = por %p27, %p28
      %p30 = scmp.ne.s32.totalorder %s22, %s25
      %p31 = scmp.eq.s32.totalorder %s12, 0
      %p32 = por %p30, %p31
      %p33 = scmp.ne.s32.totalorder %s22, %s25
      %p34 = scmp.eq.s32.totalorder %s17, 1
      %p35 = por %p33, %p34
      %p36 = scmp.ne.s32.totalorder %s25, %s26
      %p37 = scmp.eq.s32.totalorder %s17, 0
      %p38 = por %p36, %p37
      %p39 = scmp.ne.s32.totalorder %s25, %s26
      %p40 = scmp.eq.s32.totalorder %s18, 1
      %p41 = por %p39, %p40
      %p43 = scmp.ne.s32.totalorder %s26, %s42
      %p44 = scmp.eq.s32.totalorder %s18, 0
      %p45 = por %p43, %p44
      %s47 = sadd.s32 %s46, 1
      %p50 = scmp.eq.s32.totalorder %s12, 1
      %p51 = scmp.ne.s32.totalorder %s46, %s48
      %p52 = scmp.eq.s32.totalorder %s12, 0
      %p53 = por %p51, %p52
      %p54 = scmp.ne.s32.totalorder %s46, %s48
      %p55 = scmp.eq.s32.totalorder %s17, 1
      %p56 = por %p54, %p55
      %p57 = scmp.ne.s32.totalorder %s48, %s49
      %p58 = scmp.eq.s32.totalorder %s17, 0
      %p59 = por %p57, %p58
      %p60 = scmp.ne.s32.totalorder %s48, %s49
      %p61 = scmp.eq.s32.totalorder %s18, 1
      %p62 = por %p60, %p61
      %p64 = scmp.ne.s32.totalorder %s49, %s63
      %p65 = scmp.eq.s32.totalorder %s18, 0
      %p66 = por %p64, %p65
      %s68 = sadd.s32 %s67, 1
      %p71 = scmp.eq.s32.totalorder %s12, 1
      %p72 = scmp.ne.s32.totalorder %s67, %s69
      %p73 = scmp.eq.s32.totalorder %s12, 0
      %p74 = por %p72, %p73
      %p75 = scmp.ne.s32.totalorder %s67, %s69
      %p76 = scmp.eq.s32.totalorder %s17, 1
      %p77 = por %p75, %p76
      %p78 = scmp.ne.s32.totalorder %s69, %s70
      %p79 = scmp.eq.s32.totalorder %s17, 0
      %p80 = por %p78, %p79
      %p81 = scmp.ne.s32.totalorder %s69, %s70
      %p82 = scmp.eq.s32.totalorder %s18, 1
      %p83 = por %p81, %p82
      %p85 = scmp.ne.s32.totalorder %s70, %s84
      %p86 = scmp.eq.s32.totalorder %s18, 0
      %p87 = por %p85, %p86
      %s88 = ssub.s32 %s12, %s19
      %p89 = scmp.eq.s32.totalorder %s88, 0
      %s91 = sadd.s32 %s90, 1
      %s92 = scalar_select %p89, %s90, %s91
      %p95 = pneg %p89
      %p96 = scmp.eq.s32.totalorder %s12, 1
      %p97 = por %p95, %p96
      %p98 = scmp.ne.s32.totalorder %s90, %s93
      %p99 = scmp.eq.s32.totalorder %s12, 0
      %p100 = por %p98, %p99
      %p101 = scmp.ne.s32.totalorder %s90, %s93
      %p102 = scmp.eq.s32.totalorder %s17, 1
      %p103 = por %p101, %p102
      %p104 = scmp.ne.s32.totalorder %s93, %s94
      %p105 = scmp.eq.s32.totalorder %s17, 0
      %p106 = por %p104, %p105
      %p107 = scmp.ne.s32.totalorder %s93, %s94
      %p108 = scmp.eq.s32.totalorder %s18, 1
      %p109 = por %p107, %p108
      %p111 = scmp.ne.s32.totalorder %s94, %s110
      %p112 = scmp.eq.s32.totalorder %s18, 0
      %p113 = por %p111, %p112
      %p114 = scmp.le.s32.totalorder 1, %s12
      %p115 = scmp.lt.s32.totalorder %s12, 3
      %p116 = pnand %p114, %p115
      %p117 = pneg %p116
      // Predicated region
      $region9: #{tpu_custom_call.1} parent=5 // pred_check
        _
      $region10: #{tpu_custom_call.1} parent=5 // pred_check_branch
        %119 = sbr.rel (%p116) target = $region12
      $region11: #{tpu_custom_call.1} parent=5 // pred_region
        %s120 = ssub.s32 %s12, 1
        // Predicated region
        $region13: #{tpu_custom_call.1} parent=11 // pred_check
          %p121 = pneg %p59
        $region14: #{tpu_custom_call.1} parent=11 // pred_check_branch
          %123 = sbr.rel (%p121) target = $region16
        $region15: #{tpu_custom_call.1} parent=11 // pred_region
          _
        $region16: #{tpu_custom_call.1} parent=11 // pred_fallthru
          _
        // Predicated region
        $region17: #{tpu_custom_call.1} parent=11 // pred_check
          %p124 = pneg %p80
        $region18: #{tpu_custom_call.1} parent=11 // pred_check_branch
          %126 = sbr.rel (%p124) target = $region20
        $region19: #{tpu_custom_call.1} parent=11 // pred_region
          _
        $region20: #{tpu_custom_call.1} parent=11 // pred_fallthru
          _
      $region12: #{tpu_custom_call.1} parent=5 // pred_fallthru
        _
      %p127 = scmp.lt.s32.totalorder %s12, 2
      // Predicated region
      $region21: #{tpu_custom_call.1} parent=5 // pred_check
        %p128 = pneg %p127
      $region22: #{tpu_custom_call.1} parent=5 // pred_check_branch
        %130 = sbr.rel (%p128) target = $region24
      $region23: #{tpu_custom_call.1} parent=5 // pred_region
        // Predicated region
        $region25: #{tpu_custom_call.1} parent=23 // pred_check
          %p131 = pneg %p32
        $region26: #{tpu_custom_call.1} parent=23 // pred_check_branch
          %133 = sbr.rel (%p131) target = $region28
        $region27: #{tpu_custom_call.1} parent=23 // pred_region
          %p134 = scmp.lt.s32.totalorder %s12, 1
          %s135 = scalar_select %p134, %s12, 1
          %s136 = smul.addr %s135, 4
          %s137 = scalar_lea.vmem %s0, %s136
        $region28: #{tpu_custom_call.1} parent=23 // pred_fallthru
          _
      $region24: #{tpu_custom_call.1} parent=5 // pred_fallthru
        _
      %p138 = scmp.le.s32.totalorder 1, %s12
      %p139 = scmp.lt.s32.totalorder %s12, 3
      %p140 = pnand %p138, %p139
      %p141 = pneg %p140
      // Predicated region
      $region29: #{tpu_custom_call.1} parent=5 // pred_check
        _
      $region30: #{tpu_custom_call.1} parent=5 // pred_check_branch
        %143 = sbr.rel (%p140) target = $region32
      $region31: #{tpu_custom_call.1} parent=5 // pred_region
        %s144 = ssub.s32 %s12, 1
        %p145 = scmp.lt.s32.totalorder %s17, 1
        %s146 = scalar_select %p145, %s17, 1
        %s147 = smul.addr %s146, 4
        %s148 = scalar_lea.vmem %s0, %s147
        %p149 = pneg %p38
        %p150 = pneg %p35
        %p151 = pneg %p59
        %p152 = pneg %p56
        %p153 = pneg %p80
        %p154 = pneg %p77
        %p155 = pneg %p106
        %p156 = pneg %p103
        %s157 = sand.u32 %s93, 1
        %s158 = scalar_lea.sflag [#allocation3], %s157
        %s159 = sand.u32 %s93, 1
        %s160 = smul.addr %s159, 4
        %s161 = scalar_lea.vmem [#allocation2], %s160
        %p162 = scmp.lt.s32.totalorder %s17, 1
        %s163 = scalar_select %p162, %s17, 1
        %s164 = smul.addr %s163, 4
        %s165 = scalar_lea.vmem %s0, %s164
        %v166 = vld [vmem:[%s165] sm:$0xf]
        %vm167 = vcmask 125952
        %v168 = vsel %vm167, %v166, 0.0
        %169 = vadd.xlane.f32.xlu0 %v168
        %v170 = vpop.xlane.xlu0 %169
        %v171 = vrot.slane %v170, 4
        %v172 = vadd.f32 %v170, %v171
        %v173 = vrot.slane %v172, 2
        %v174 = vadd.f32 %v172, %v173
        %v175 = vrot.slane %v174, 1
        %v176 = vadd.f32 %v174, %v175
        %s177 = vtos %v176
        %v178 = vmul.f32 %v166, %v166
        %v179 = vsel %vm167, %v178, 0.0
        %180 = vadd.xlane.f32.xlu0 %v179
        %v181 = vpop.xlane.xlu0 %180
        %v182 = vrot.slane %v181, 4
        %v183 = vadd.f32 %v181, %v182
        %v184 = vrot.slane %v183, 2
        %v185 = vadd.f32 %v183, %v184
        %v186 = vrot.slane %v185, 1
        %v187 = vadd.f32 %v185, %v186
        %s188 = vtos %v187
        %s189 = smul.f32 %s177, 0.015625
        %s190 = smul.f32 %s188, 0.015625
        %s191 = smul.f32 %s189, %s189
        %s192 = ssub.f32 %s190, %s191
        %s193 = smax.f32 %s192, 0.0
        %s194 = sadd.f32 %s193, 1e-05
        %v195 = vstv %s194
        %v196 = vrsqrt.pop %v195
        %s197 = vtos %v196
        %v198 = vld [vmem:[%s1] sm:$0xf]
        %v199 = vstv %s197
        %v200 = vmul.f32 %v198, %v199
        %v201 = vld [vmem:[%s2] sm:$0xf]
        %v202 = vstv %s189
        %v203 = vmul.f32 %v202, %v200
        %v204 = vsub.f32 %v201, %v203
        %206 = vset.pattern.permute.xlu0 0
        %207 = vperm.xlu0 %206, %v200
        %v208 = vpop.permute.xlu0 %207
        %v210 = vmul.f32 %v166, %v208
        %212 = vset.pattern.permute.xlu0 0
        %213 = vperm.xlu0 %212, %v204
        %v214 = vpop.permute.xlu0 %213
        %v216 = vadd.f32 %v210, %v214
        %217 = vst.msk [vmem:[%s161] sm:$0xf] %vm167, %v216
        %s218 = sand.u32 %s93, 1
        %s219 = scalar_lea.sflag [#allocation3], %s218
        %s220 = sand.u32 %s93, 1
        %s221 = smul.addr %s220, 4
        %s222 = scalar_lea.vmem [#allocation2], %s221
        // Predicated region
        $region33: #{tpu_custom_call.1} parent=31 // pred_check
          %p223 = pneg %p103
        $region34: #{tpu_custom_call.1} parent=31 // pred_check_branch
          %225 = sbr.rel (%p223) target = $region36
        $region35: #{tpu_custom_call.1} parent=31 // pred_region
          %s227 = ssub.s32 64, 64
          %228 = vsyncadd %s219, %s227
          %s229 = smul.addr %s17, 64
          %s230 = scalar_lea.hbm %s3, %s229
          %s232 = sshll.u32 %s222, 4
          %s233 = int_to_ptr.vmem [resolvable:$true] %s232
          %235 = dma.vmem_to_hbm [thread:$0]  %s233, 64, %s230, %s219
        $region36: #{tpu_custom_call.1} parent=31 // pred_fallthru
          _
      $region32: #{tpu_custom_call.1} parent=5 // pred_fallthru
        _
      %p236 = scmp.le.s32.totalorder 2, %s12
      // Predicated region
      $region37: #{tpu_custom_call.1} parent=5 // pred_check
        %p237 = pneg %p236
      $region38: #{tpu_custom_call.1} parent=5 // pred_check_branch
        %239 = sbr.rel (%p237) target = $region40
      $region39: #{tpu_custom_call.1} parent=5 // pred_region
        %s240 = ssub.s32 %s12, 2
        // Predicated region
        $region41: #{tpu_custom_call.1} parent=39 // pred_check
          %p241 = pneg %p109
        $region42: #{tpu_custom_call.1} parent=39 // pred_check_branch
          %243 = sbr.rel (%p241) target = $region44
        $region43: #{tpu_custom_call.1} parent=39 // pred_region
          %s244 = sand.u32 %s94, 1
          %s245 = scalar_lea.sflag [#allocation3], %s244
          %s246 = sand.u32 %s94, 1
          %s247 = smul.addr %s246, 4
          %s248 = scalar_lea.vmem [#allocation2], %s247
          %249 = dma.done %s245, 64
        $region44: #{tpu_custom_call.1} parent=39 // pred_fallthru
          _
      $region40: #{tpu_custom_call.1} parent=5 // pred_fallthru
        _
    $region6: #{tpu_custom_call.1} parent=1 // loop_footer
      %s16 = sadd.s32 1, %s12
    $region7: #{tpu_custom_call.1} parent=1 // loop_footer_branch
      %11 = sbr.rel target = $region3
    $region8: #{tpu_custom_call.1} parent=1 // loop_exit
      _
    %250 = vsyncpa [#allocation3], 1
    %s251 = scalar_lea.sflag [#allocation3], 1
    %252 = vsyncpa %s251, 1

</llo_original>
